<compile_context>
chip_gen: v6e
topology: v6e:2x2x1
jax: 0.10.0
libtpu: 0.0.40
codegen_flags: <defaults>
</compile_context>

<pallas_src>
import numpy as np

import jax
import jax.numpy as jnp
from jax.experimental import pallas as pl
from jax.experimental.pallas import tpu as pltpu


_LANES = 128                          # lane width: last dim of every block
_TARGET_BLOCK_BYTES = 4 * 1024 * 1024 # ~4 MiB per block (review: 2-4 MiB v5e/v6e, 4-8 MiB v7x)
_VMEM_LIMIT_CAP = 48 * 1024 * 1024    # stay under v7x's 64 MiB physical VMEM
_SMALL_INPUT_BYTES = 1 * 1024 * 1024  # below this, skip the kernel entirely


def _sublane_multiple(dtype) -> int:
    """Dtype-aware sublane rounding: 8 for 4-byte, 16 for 2-byte, 32 for 1-byte."""
    itemsize = jnp.dtype(dtype).itemsize
    return max(8, 32 // max(1, itemsize))


def _copy_kernel(x_ref, o_ref):
    # TODO(synk): original TorchvisionModel.forward is `pass` (no computation);
    # this kernel is a pure VMEM pass-through kept only to exercise the Pallas path.
    o_ref[...] = x_ref[...]


def _pick_tile_rows(rows: int, sub: int, max_rows: int) -> int:
    """Largest multiple of `sub` <= max_rows that divides `rows` evenly.

    Guarantees every grid step is a full (unmasked) block.  Falls back to a
    sublane-aligned tile with a partial last block if no clean divisor exists
    (still correct: Pallas masks the out-of-bounds tail).
    """
    cap = min(rows, max_rows)
    cap -= cap % sub
    t = cap
    while t >= sub:
        if rows % t == 0:
            return t
        t -= sub
    # No clean divisor; accept a partial final block.
    t = min(rows, max_rows)
    t -= t % sub
    return max(t, sub)


def pallas_identity_copy(x: jax.Array) -> jax.Array:
    """Identity pass-through routed through a tiled, lane-dense Pallas copy.

    Only takes the kernel path when the data is already lane-dense; otherwise
    returns x directly (identity) to avoid wrapper-side pad/slice HBM passes.
    """
    if x.size == 0:
        return x  # degenerate grid guard (previously cdiv(0, 0))

    itemsize = jnp.dtype(x.dtype).itemsize
    sub = _sublane_multiple(x.dtype)
    total = x.size

    if total % _LANES != 0:
        # Ragged lane tail -> would need pad + slice round-trips in HBM; the
        # model forward is a no-op, so just return the input.
        return x
    rows = total // _LANES
    if rows % sub != 0:
        return x

    max_rows = max(sub, _TARGET_BLOCK_BYTES // (_LANES * itemsize))
    tile_rows = _pick_tile_rows(rows, sub, max_rows)
    block_bytes = tile_rows * _LANES * itemsize

    # 2 arrays x 2 pipeline buffers x block, plus headroom; capped for v7x.
    vmem_limit = min(_VMEM_LIMIT_CAP, max(16 * 1024 * 1024, 4 * block_bytes + 4 * 1024 * 1024))

    x2d = x.reshape(rows, _LANES)

    out2d = pl.pallas_call(
        _copy_kernel,
        out_shape=jax.ShapeDtypeStruct((rows, _LANES), x2d.dtype),
        grid=(pl.cdiv(rows, tile_rows),),
        in_specs=[pl.BlockSpec((tile_rows, _LANES), lambda i: (i, 0))],
        out_specs=pl.BlockSpec((tile_rows, _LANES), lambda i: (i, 0)),
        # Output reuses the input HBM buffer (XLA elides the writeback when
        # the input buffer is donatable).
        input_output_aliases={0: 0},
        compiler_params=pltpu.CompilerParams(
            # TODO(synk): on v7x, pltpu.CORE_PARALLEL (or pl.core_map over a
            # tensorcore mesh) would engage both TensorCores' copy engines;
            # kept as plain "parallel" for portability across v5e/v6e/v7x.
            dimension_semantics=("parallel",),
            vmem_limit_bytes=vmem_limit,
        ),
    )(x2d)

    return out2d.reshape(x.shape)


def torchvision_model_forward(x: jax.Array, force_kernel: bool = False) -> jax.Array:
    """Pallas 'forward' for the stub TorchvisionModel.

    The reference forward is a no-op, so the optimized default path returns the
    input unchanged with zero HBM traffic.  The Pallas identity-copy kernel is
    used only when forced or when the input is large enough that exercising the
    kernel path is meaningful.
    """
    if not force_kernel and x.size * jnp.dtype(x.dtype).itemsize < _SMALL_INPUT_BYTES:
        return x
    return pallas_identity_copy(x)


def torchvision_model_forward_strict(x: jax.Array):
    """Exact semantic match of the PyTorch forward: does nothing, returns None."""
    del x
    return None


if __name__ == "__main__":
    key = jax.random.PRNGKey(0)
    # Small NCHW input consistent with a torchvision-style image model stub.
    x = jax.random.normal(key, (2, 4, 16, 16), dtype=jnp.float32)

    # Host-side reference captured before the (potentially aliasing) kernel call.
    x_host = np.asarray(jax.device_get(x))

    # Exercise the Pallas kernel path once.
    out = torchvision_model_forward(x, force_kernel=True)
    out = jax.block_until_ready(out)

    assert out.shape == x.shape
    assert out.dtype == x.dtype
    assert np.allclose(np.asarray(jax.device_get(out)), x_host), "identity pass-through mismatch"

    # Optimized default path: tiny input -> no kernel launch, returns x as-is.
    fast = torchvision_model_forward(x)
    assert fast is x

    # Exact-semantics variant (matches PyTorch `forward`, which returns None).
    strict = torchvision_model_forward_strict(x)
    assert strict is None

    print("KERNEL_OK")
</pallas_src>

<mosaic_0001>
module attributes {stable_mosaic.version = 11 : i64} {
  func.func @_copy_kernel(%arg0: i32, %arg1: memref<16x128xf32, #tpu.memory_space<vmem>>, %arg2: memref<16x128xf32, #tpu.memory_space<vmem>>) attributes {dimension_semantics = [#tpu.dimension_semantics<parallel>], iteration_bounds = array<i64: 1>, scalar_prefetch = 0 : i64, scratch_operands = 0 : i64, tpu.core_type = #tpu.core_type<tc>, window_params = [{transform_indices = @transform_0, window_bounds = array<i64: 16, 128>}, {transform_indices = @transform_1, window_bounds = array<i64: 16, 128>}]} {
    %c0 = arith.constant 0 : index
    %c0_0 = arith.constant 0 : index
    %0 = vector.load %arg1[%c0, %c0_0] : memref<16x128xf32, #tpu.memory_space<vmem>>, vector<16x128xf32>
    %c0_1 = arith.constant 0 : index
    %c0_2 = arith.constant 0 : index
    %1 = vector.load %arg2[%c0_1, %c0_2] : memref<16x128xf32, #tpu.memory_space<vmem>>, vector<16x128xf32>
    tpu.vector_store %arg2[%c0_1, %c0_2], %0 {strides = array<i32>} : memref<16x128xf32, #tpu.memory_space<vmem>>, vector<16x128xf32>,
    return
  }
  func.func @transform_0(%arg0: i32) -> (i32, i32) {
    %c0_i32 = arith.constant 0 : i32
    %c0_i32_0 = arith.constant 0 : i32
    return %arg0, %c0_i32 : i32, i32
  }
  func.func @transform_1(%arg0: i32) -> (i32, i32) {
    %c0_i32 = arith.constant 0 : i32
    %c0_i32_0 = arith.constant 0 : i32
    return %arg0, %c0_i32 : i32, i32
  }
}

</mosaic_0001>

<llo_original>
// kernel: tpu_custom_call.1
$region0: #{tpu_custom_call.1}
  #allocation0 [shape = 'u32[]', space=smem, size = 0x4, offset = 0x4, fixed_abs, tag = 'smem constant byte address 0x4 - core index']
  #allocation1 [shape = 'u32[144,128]{1,0:T(1,128)}', space=vmem, size = 0x12000, scoped, tag = 'internal scratch']
  %s0 = inlined_call_operand.hbm [shape: f32[16,128], index: 0, kind: input, shape index: {}, may-alias: {0,1}]
  %s1 = inlined_call_operand.hbm [shape: f32[16,128], index: 1, kind: output, shape index: {}, may-alias: {0,1}]
  %s2 = sld [smem:[#allocation0]]
  $region18: #{tpu_custom_call.1} parent=0
    _
  %s4 = ssub.s32 1, %s2
  %s5 = scalar_select 0, %s4, %s2
  $region1: #{tpu_custom_call.1} parent=0
    #allocation2 [shape = 'u8[8192]{0}', space=vmem, size = 0x2000, scoped, tag = 'input window, operand 0, single buffered']
    #allocation3 [shape = 's32[1]{0}', space=sflag, size = 0x4, scoped, tag = 'scoped memory for tpu_custom_call.1']
    #allocation4 [shape = 's32[1]{0}', space=sflag, size = 0x4, scoped, tag = 'scoped memory for tpu_custom_call.1']
    #allocation5 [shape = 'u8[8192]{0}', space=vmem, size = 0x2000, scoped, tag = 'output window, operand 0, single buffered']
    %6 = vsyncpa [#allocation3], 0
    %7 = vsyncpa [#allocation4], 0
    // Predicated region
    $region2: #{tpu_custom_call.1} parent=1 // pred_check
      _
    $region3: #{tpu_custom_call.1} parent=1 // pred_check_branch
      %9 = sbr.rel (0) target = $region5
    $region4: #{tpu_custom_call.1} parent=1 // pred_region
      %s11 = ssub.s32 256, 256
      %12 = vsyncadd [#allocation3], %s11
      %s13 = sshll.u32 [#allocation2], 4
      %s14 = int_to_ptr.vmem [resolvable:$true] %s13
      %19 = dma.hbm_to_vmem [thread:$0]  %s0, 256, %s14, [#allocation3], 128, 128, 8
    $region5: #{tpu_custom_call.1} parent=1 // pred_fallthru
      _
    // Predicated region
    $region6: #{tpu_custom_call.1} parent=1 // pred_check
      _
    $region7: #{tpu_custom_call.1} parent=1 // pred_check_branch
      %21 = sbr.rel (0) target = $region9
    $region8: #{tpu_custom_call.1} parent=1 // pred_region
      %22 = dma.done [#allocation3], 256
    $region9: #{tpu_custom_call.1} parent=1 // pred_fallthru
      _
    %v23 = vld [vmem:[#allocation2] sm:$0xff]
    %v24 = vld [vmem:[#allocation2 + $0x8] sm:$0xff]
    %25 = vst [vmem:[#allocation5] sm:$0xff] %v23
    %26 = vst [vmem:[#allocation5 + $0x8] sm:$0xff] %v24
    // Predicated region
    $region10: #{tpu_custom_call.1} parent=1 // pred_check
      _
    $region11: #{tpu_custom_call.1} parent=1 // pred_check_branch
      %28 = sbr.rel (0) target = $region13
    $region12: #{tpu_custom_call.1} parent=1 // pred_region
      %s30 = ssub.s32 256, 256
      %31 = vsyncadd [#allocation4], %s30
      %s32 = sshll.u32 [#allocation5], 4
      %s33 = int_to_ptr.vmem [resolvable:$true] %s32
      %38 = dma.vmem_to_hbm [thread:$0]  %s33, 256, %s1, [#allocation4], 128, 128, 8
    $region13: #{tpu_custom_call.1} parent=1 // pred_fallthru
      _
    // Predicated region
    $region14: #{tpu_custom_call.1} parent=1 // pred_check
      _
    $region15: #{tpu_custom_call.1} parent=1 // pred_check_branch
      %40 = sbr.rel (0) target = $region17
    $region16: #{tpu_custom_call.1} parent=1 // pred_region
      %41 = dma.done [#allocation4], 256
    $region17: #{tpu_custom_call.1} parent=1 // pred_fallthru
      _
    %42 = vsyncpa [#allocation3], 1
    %43 = vsyncpa [#allocation4], 1

</llo_original>
